<compile_context>
chip_gen: v7x
topology: tpu7x:2x2x1
jax: 0.10.0
libtpu: 0.0.40
codegen_flags: <defaults>
</compile_context>

<pallas_src>
import functools

import jax
import jax.numpy as jnp
from jax.experimental import pallas as pl
from jax.experimental.pallas import tpu as pltpu

DROPOUT_P = 0.5
SCALE_FACTOR = 1.0  # == 1.0 -> folded away (would be folded into wq at pack time otherwise)

# Model dimensions implied by the module's __init__ / forward.
D_Q_IN = 8   # linear_q in_features
D_K_IN = 5   # linear_k in_features
D_V_IN = 5   # linear_v in_features
D_ATTN = 3   # linear_q out_features (attention contraction dim)
D_OUT = 3    # linear_v out_features

D_IN_PAD = D_Q_IN + 1          # 8 feature columns + 1 "ones" column for the bias trick
N_FUSED = 2 * D_ATTN + D_OUT   # [wq | wk | wv] packed along N -> 9


def attn_kernel(x_ref, w_ref, mask_ref, o_ref, *, B, Sq, Sk):
    Mq = B * Sq
    Mk = B * Sk

    # ONE fused projection matmul for q/k/v; biases ride along via the ones column.
    proj = jnp.dot(x_ref[...], w_ref[...],
                   preferred_element_type=jnp.float32)            # (Mq + 2*Mk, 9)
    qp = proj[0:Mq, 0:D_ATTN]                                     # (Mq, 3)
    kp = proj[Mq:Mq + Mk, D_ATTN:2 * D_ATTN]                      # (Mk, 3)
    vp = proj[Mq + Mk:Mq + 2 * Mk, 2 * D_ATTN:2 * D_ATTN + D_OUT]  # (Mk, 3)

    # One score matmul for every (batch, query, key) pair; cross-batch pairs removed with
    # an additive block-diagonal mask BEFORE the softmax so normalization stays per-batch.
    qk = jax.lax.dot_general(qp, kp, (((1,), (1,)), ((), ())),
                             preferred_element_type=jnp.float32)  # (Mq, Mk)
    # scale_factor == 1.0 -> no runtime multiply.
    logits = qk + mask_ref[0]

    m = jnp.max(logits, axis=-1, keepdims=True)
    e = jnp.exp(logits - m)
    probs = e / jnp.sum(e, axis=-1, keepdims=True)   # exact divide for numerical parity

    # Training-mode dropout (p=0.5): pre-scaled multiplicative keep mask.
    probs = probs * mask_ref[1]

    o_ref[...] = jnp.dot(probs, vp,
                         preferred_element_type=jnp.float32).astype(o_ref.dtype)


def model_forward(q, k, v, params, dropout_key):
    wq, bq, wk, bk, wv, bv = params
    B, Sq, _ = q.shape
    _, Sk, _ = k.shape
    Mq, Mk = B * Sq, B * Sk

    # ---- Activation slab: [q ; k zero-padded to 8 ; v zero-padded to 8] + ones column. ----
    qf = q.reshape(Mq, D_Q_IN)
    kf = jnp.concatenate(
        [k.reshape(Mk, D_K_IN), jnp.zeros((Mk, D_Q_IN - D_K_IN), jnp.float32)], axis=1)
    vf = jnp.concatenate(
        [v.reshape(Mk, D_V_IN), jnp.zeros((Mk, D_Q_IN - D_V_IN), jnp.float32)], axis=1)
    acts = jnp.concatenate([qf, kf, vf], axis=0)                          # (Mq+2Mk, 8)
    x_slab = jnp.concatenate(
        [acts, jnp.ones((Mq + 2 * Mk, 1), jnp.float32)], axis=1)          # (Mq+2Mk, 9)

    # ---- Weight slab (9, 9): cols [0:3]=linear_q, [3:6]=linear_k, [6:9]=linear_v,
    #      last row = biases (multiplied by the ones column). ----
    w_slab = jnp.zeros((D_IN_PAD, N_FUSED), jnp.float32)
    w_slab = w_slab.at[0:D_Q_IN, 0:D_ATTN].set(wq)
    w_slab = w_slab.at[D_Q_IN, 0:D_ATTN].set(bq)
    w_slab = w_slab.at[0:D_K_IN, D_ATTN:2 * D_ATTN].set(wk)
    w_slab = w_slab.at[D_Q_IN, D_ATTN:2 * D_ATTN].set(bk)
    w_slab = w_slab.at[0:D_V_IN, 2 * D_ATTN:].set(wv)
    w_slab = w_slab.at[D_Q_IN, 2 * D_ATTN:].set(bv)

    # ---- Mask slab (2, Mq, Mk): [0] additive block-diagonal batch mask (pre-softmax),
    #      [1] pre-scaled dropout keep mask (post-softmax). ----
    row_b = (jnp.arange(Mq) // Sq)[:, None]
    col_b = (jnp.arange(Mk) // Sk)[None, :]
    add_mask = jnp.where(row_b == col_b, 0.0, -1e30).astype(jnp.float32)
    keep = jax.random.bernoulli(dropout_key, 1.0 - DROPOUT_P, (Mq, Mk))
    drop_mask = keep.astype(jnp.float32) * (1.0 / (1.0 - DROPOUT_P))
    mask_slab = jnp.stack([add_mask, drop_mask], axis=0)

    kernel = functools.partial(attn_kernel, B=B, Sq=Sq, Sk=Sk)
    vmem = pltpu.MemorySpace.VMEM

    # Gridless call (grid=()) with 3 full-array VMEM operands: no pipeline prologue /
    # double-buffer setup, only 3 operand DMAs + 1 output DMA.  Splitting this across
    # TensorCores or tuning VMEM/tiles is deliberately NOT done (latency-bound kernel).
    out_flat = pl.pallas_call(
        kernel,
        out_shape=jax.ShapeDtypeStruct((Mq, D_OUT), jnp.float32),
        in_specs=[pl.BlockSpec(memory_space=vmem)] * 3,
        out_specs=pl.BlockSpec(memory_space=vmem),
    )(x_slab, w_slab, mask_slab)

    return out_flat.reshape(B, Sq, D_OUT), drop_mask


def reference_forward(q, k, v, params, drop_mask_full):
    """Pure-jnp reference (adjusted module), using the same dropout keep-mask."""
    wq, bq, wk, bk, wv, bv = params
    B, Sq, _ = q.shape
    _, Sk, _ = k.shape
    qp = q @ wq + bq
    kp = k @ wk + bk
    vp = v @ wv + bv
    qk = jnp.einsum("bqd,bkd->bqk", qp, kp) * SCALE_FACTOR
    p = jax.nn.softmax(qk, axis=-1)
    dm = jnp.stack(
        [drop_mask_full[b * Sq:(b + 1) * Sq, b * Sk:(b + 1) * Sk] for b in range(B)], axis=0)
    p = p * dm
    return jnp.einsum("bqk,bkd->bqd", p, vp)


def init_linear(key, d_in, d_out):
    """PyTorch-style uniform(-1/sqrt(in), 1/sqrt(in)) init; W stored as (in, out)."""
    kw, kb = jax.random.split(key)
    bound = 1.0 / jnp.sqrt(float(d_in))
    w = jax.random.uniform(kw, (d_in, d_out), jnp.float32, -bound, bound)
    b = jax.random.uniform(kb, (d_out,), jnp.float32, -bound, bound)
    return w, b


if __name__ == "__main__":
    key = jax.random.PRNGKey(0)
    k_q, k_k, k_v, k_lq, k_lk, k_lv, k_drop = jax.random.split(key, 7)

    B, Sq, Sk = 2, 5, 3
    q = jax.random.normal(k_q, (B, Sq, D_Q_IN), jnp.float32)
    k = jax.random.normal(k_k, (B, Sk, D_K_IN), jnp.float32)
    v = jax.random.normal(k_v, (B, Sk, D_V_IN), jnp.float32)

    wq, bq = init_linear(k_lq, D_Q_IN, D_ATTN)
    wk, bk = init_linear(k_lk, D_K_IN, D_ATTN)   # adjusted out dim (see TODO above)
    wv, bv = init_linear(k_lv, D_V_IN, D_OUT)
    params = (wq, bq, wk, bk, wv, bv)

    out, drop_mask = model_forward(q, k, v, params, dropout_key=k_drop)
    out = jax.block_until_ready(out)

    assert out.shape == (B, Sq, D_OUT), out.shape
    assert bool(jnp.all(jnp.isfinite(out)))

    ref = reference_forward(q, k, v, params, drop_mask)
    assert bool(jnp.allclose(out, ref, rtol=1e-3, atol=1e-3)), (
        float(jnp.max(jnp.abs(out - ref))))

    print("KERNEL_OK")
</pallas_src>

<mosaic_0001>
module attributes {stable_mosaic.version = 11 : i64} {
  func.func @attn_kernel(%arg0: memref<22x9xf32, #tpu.memory_space<vmem>>, %arg1: memref<9x9xf32, #tpu.memory_space<vmem>>, %arg2: memref<2x10x6xf32, #tpu.memory_space<vmem>>, %arg3: memref<10x3xf32, #tpu.memory_space<vmem>>) attributes {dimension_semantics = [], scalar_prefetch = 0 : i64, scratch_operands = 0 : i64, tpu.core_type = #tpu.core_type<tc>} {
    %c0 = arith.constant 0 : index
    %c0_0 = arith.constant 0 : index
    %0 = vector.load %arg0[%c0, %c0_0] : memref<22x9xf32, #tpu.memory_space<vmem>>, vector<22x9xf32>
    %c0_1 = arith.constant 0 : index
    %c0_2 = arith.constant 0 : index
    %1 = vector.load %arg1[%c0_1, %c0_2] : memref<9x9xf32, #tpu.memory_space<vmem>>, vector<9x9xf32>
    %cst = arith.constant dense<0.000000e+00> : vector<22x9xf32>
    %2 = tpu.matmul %0, %1, %cst {dimension_numbers = #tpu.dot_dimension_numbers<[1], [0], [0], [1], [0, 0, 1, 1], [], []>} : vector<22x9xf32>, vector<9x9xf32>, vector<22x9xf32> -> vector<22x9xf32>
    %3 = vector.extract_strided_slice %2 {offsets = [0, 0], sizes = [10, 3], strides = [1, 1]} : vector<22x9xf32> to vector<10x3xf32>
    %4 = vector.extract_strided_slice %2 {offsets = [10, 3], sizes = [6, 3], strides = [1, 1]} : vector<22x9xf32> to vector<6x3xf32>
    %5 = vector.extract_strided_slice %2 {offsets = [16, 6], sizes = [6, 3], strides = [1, 1]} : vector<22x9xf32> to vector<6x3xf32>
    %cst_3 = arith.constant dense<0.000000e+00> : vector<10x6xf32>
    %6 = tpu.matmul %3, %4, %cst_3 {dimension_numbers = #tpu.dot_dimension_numbers<[1], [1], [0], [0], [0, 0, 1, 0], [], []>} : vector<10x3xf32>, vector<6x3xf32>, vector<10x6xf32> -> vector<10x6xf32>
    %c0_4 = arith.constant 0 : index
    %c0_5 = arith.constant 0 : index
    %c0_6 = arith.constant 0 : index
    %7 = vector.load %arg2[%c0_4, %c0_5, %c0_6] : memref<2x10x6xf32, #tpu.memory_space<vmem>>, vector<1x10x6xf32>
    %8 = vector.shape_cast %7 : vector<1x10x6xf32> to vector<10x6xf32>
    %9 = arith.addf %6, %8 : vector<10x6xf32>
    %cst_7 = arith.constant dense<0xFF800000> : vector<10xf32>
    %10 = vector.multi_reduction <maximumf>, %9, %cst_7 [1] : vector<10x6xf32> to vector<10xf32>
    %11 = vector.shape_cast %10 : vector<10xf32> to vector<10x1xf32>
    %12 = vector.broadcast %11 : vector<10x1xf32> to vector<10x6xf32>
    %13 = arith.subf %9, %12 : vector<10x6xf32>
    %14 = math.exp %13 : vector<10x6xf32>
    %cst_8 = arith.constant dense<0.000000e+00> : vector<10xf32>
    %15 = vector.multi_reduction <add>, %14, %cst_8 [1] : vector<10x6xf32> to vector<10xf32>
    %16 = vector.shape_cast %15 : vector<10xf32> to vector<10x1xf32>
    %17 = vector.broadcast %16 : vector<10x1xf32> to vector<10x6xf32>
    %18 = arith.divf %14, %17 : vector<10x6xf32>
    %c1 = arith.constant 1 : index
    %c0_9 = arith.constant 0 : index
    %c0_10 = arith.constant 0 : index
    %19 = vector.load %arg2[%c1, %c0_9, %c0_10] : memref<2x10x6xf32, #tpu.memory_space<vmem>>, vector<1x10x6xf32>
    %20 = vector.shape_cast %19 : vector<1x10x6xf32> to vector<10x6xf32>
    %21 = arith.mulf %18, %20 : vector<10x6xf32>
    %cst_11 = arith.constant dense<0.000000e+00> : vector<10x3xf32>
    %22 = tpu.matmul %21, %5, %cst_11 {dimension_numbers = #tpu.dot_dimension_numbers<[1], [0], [0], [1], [0, 0, 1, 1], [], []>} : vector<10x6xf32>, vector<6x3xf32>, vector<10x3xf32> -> vector<10x3xf32>
    %c0_12 = arith.constant 0 : index
    %c0_13 = arith.constant 0 : index
    %23 = vector.load %arg3[%c0_12, %c0_13] : memref<10x3xf32, #tpu.memory_space<vmem>>, vector<10x3xf32>
    tpu.vector_store %arg3[%c0_12, %c0_13], %22 {strides = array<i32>} : memref<10x3xf32, #tpu.memory_space<vmem>>, vector<10x3xf32>,
    return
  }
}

</mosaic_0001>

<llo_original>
// kernel: tpu_custom_call.1
$region0: #{tpu_custom_call.1}
  #allocation0 [shape = 'u32[]', space=smem, size = 0x4, offset = 0x4, fixed_abs, tag = 'smem constant byte address 0x4 - core index']
  #allocation1 [shape = 'u32[144,128]{1,0:T(1,128)}', space=vmem, size = 0x12000, scoped, tag = 'internal scratch']
  %s0 = inlined_call_operand.vmem [shape: f32[22,9], index: 0, kind: input, shape index: {}]
  %s1 = inlined_call_operand.vmem [shape: f32[9,9], index: 1, kind: input, shape index: {}]
  %s2 = inlined_call_operand.vmem [shape: f32[2,10,6], index: 2, kind: input, shape index: {}]
  %s3 = inlined_call_operand.vmem [shape: f32[10,3], index: 3, kind: output, shape index: {}]
  %s4 = sld [smem:[#allocation0]]
  $region22: #{tpu_custom_call.1} parent=0
    _
  %s6 = ssub.s32 1, %s4
  %s7 = scalar_select 0, %s6, %s4
  // Predicated region
  $region2: #{tpu_custom_call.1} parent=0 // pred_check
    _
  $region3: #{tpu_custom_call.1} parent=0 // pred_check_branch
    %9 = sbr.rel (0) target = $region5
  $region4: #{tpu_custom_call.1} parent=0 // pred_region
    _
  $region5: #{tpu_custom_call.1} parent=0 // pred_fallthru
    _
  // Predicated region
  $region6: #{tpu_custom_call.1} parent=0 // pred_check
    _
  $region7: #{tpu_custom_call.1} parent=0 // pred_check_branch
    %11 = sbr.rel (0) target = $region9
  $region8: #{tpu_custom_call.1} parent=0 // pred_region
    _
  $region9: #{tpu_custom_call.1} parent=0 // pred_fallthru
    _
  // Predicated region
  $region10: #{tpu_custom_call.1} parent=0 // pred_check
    _
  $region11: #{tpu_custom_call.1} parent=0 // pred_check_branch
    %13 = sbr.rel (0) target = $region13
  $region12: #{tpu_custom_call.1} parent=0 // pred_region
    _
  $region13: #{tpu_custom_call.1} parent=0 // pred_fallthru
    _
  %v14 = vld [vmem:[%s0] sm:$0xff]
  %v15 = vld [vmem:[%s0 + $0x8] sm:$0xff]
  %v16 = vld [vmem:[%s0 + $0x10] sm:$0x3f]
  %v17 = vld [vmem:[%s1] sm:$0xff]
  %v18 = vld [vmem:[%s1 + $0x8] sm:$0x1]
  %vm19 = vcmask 72704
  %v21 = vsel %vm19, %v14, 0
  %v24 = vsel %vm19, %v15, 0
  %v27 = vsel %vm19, %v16, 0
  %vm29 = vcmask 1040384
  %v31 = vsel %vm29, %v18, 0
  %33 = vmatprep.subr.mxu0 0.0
  %34 = vmatpush1.msra.mxu0 %v17
  %35 = vmatprep.subr.mxu0 0.0
  %36 = vmatpush1.msra.mxu0 %v31
  %37 = vmatprep.subr.mxu0 0.0
  %38 = vmatpush1.msra.mxu0 0.0
  %39 = vmatprep.subr.mxu0 0.0
  %40 = vmatpush1.msra.mxu0 0.0
  %41 = vmatprep.subr.mxu0 0.0
  %42 = vmatpush1.msra.mxu0 0.0
  %43 = vmatprep.subr.mxu0 0.0
  %44 = vmatpush1.msra.mxu0 0.0
  %45 = vmatprep.subr.mxu0 0.0
  %46 = vmatpush1.msra.mxu0 0.0
  %47 = vmatprep.subr.mxu0 0.0
  %48 = vmatpush1.msra.mxu0 0.0
  %49 = vmatprep.subr.mxu0 0.0
  %50 = vmatpush1.msra.mxu0 0.0
  %51 = vmatprep.subr.mxu0 0.0
  %52 = vmatpush1.msra.mxu0 0.0
  %53 = vmatprep.subr.mxu0 0.0
  %54 = vmatpush1.msra.mxu0 0.0
  %55 = vmatprep.subr.mxu0 0.0
  %56 = vmatpush1.msra.mxu0 0.0
  %57 = vmatprep.subr.mxu0 0.0
  %58 = vmatpush1.msra.mxu0 0.0
  %59 = vmatprep.subr.mxu0 0.0
  %60 = vmatpush1.msra.mxu0 0.0
  %61 = vmatprep.subr.mxu0 0.0
  %62 = vmatpush1.msra.mxu0 0.0
  %63 = vmatprep.subr.mxu0 0.0
  %64 = vmatpush1.msra.mxu0 0.0
  %65 = vmatprep.subr.mxu0 0.0
  %66 = vmatpush1.msra.mxu0 0.0
  %67 = vmatprep.subr.mxu0 0.0
  %68 = vmatpush1.msra.mxu0 0.0
  %69 = vmatprep.subr.mxu0 0.0
  %70 = vmatpush1.msra.mxu0 0.0
  %71 = vmatprep.subr.mxu0 0.0
  %72 = vmatpush1.msra.mxu0 0.0
  %73 = vmatprep.subr.mxu0 0.0
  %74 = vmatpush1.msra.mxu0 0.0
  %75 = vmatprep.subr.mxu0 0.0
  %76 = vmatpush1.msra.mxu0 0.0
  %77 = vmatprep.subr.mxu0 0.0
  %78 = vmatpush1.msra.mxu0 0.0
  %79 = vmatprep.subr.mxu0 0.0
  %80 = vmatpush1.msra.mxu0 0.0
  %81 = vmatprep.subr.mxu0 0.0
  %82 = vmatpush1.msra.mxu0 0.0
  %83 = vmatprep.subr.mxu0 0.0
  %84 = vmatpush1.msra.mxu0 0.0
  %85 = vmatprep.subr.mxu0 0.0
  %86 = vmatpush1.msra.mxu0 0.0
  %87 = vmatprep.subr.mxu0 0.0
  %88 = vmatpush1.msra.mxu0 0.0
  %89 = vmatprep.subr.mxu0 0.0
  %90 = vmatpush1.msra.mxu0 0.0
  %91 = vmatprep.subr.mxu0 0.0
  %92 = vmatpush1.msra.mxu0 0.0
  %93 = vmatprep.subr.mxu0 0.0
  %94 = vmatpush1.msra.mxu0 0.0
  %95 = vmatprep.subr.mxu0 0.0
  %96 = vmatpush1.msra.mxu0 0.0
  %97 = vmatprep.mubr.f32.mxu0 0.0
  %98 = vmatmul.mubr.f32.gmra.mrb[0].mxu0 %v21
  %v99 = vpop.f32.mrb[0].mxu0
  %v100 = vadd.f32 0.0, %v99
  %v101 = vpop.f32.mrb[0].mxu0
  %102 = vmatprep.mubr.f32.mxu0 0.0
  %103 = vmatmul.mubr.f32.gmra.mrb[0].mxu0 %v24
  %v104 = vpop.f32.mrb[0].mxu0
  %v105 = vadd.f32 0.0, %v104
  %v106 = vpop.f32.mrb[0].mxu0
  %107 = vmatprep.mubr.f32.mxu0 0.0
  %108 = vmatmul.mubr.f32.gmra.mrb[0].mxu0 %v27
  %v109 = vpop.f32.mrb[0].mxu0
  %v110 = vadd.f32 0.0, %v109
  %v111 = vpop.f32.mrb[0].mxu0
  %112 = vdwg.mxu0
  %v113 = vld [vmem:[%s2] sm:$0xff]
  %v114 = vld [vmem:[%s2 + $0x8] sm:$0x3]
  %v116 = vrot.slane %v105, 2
  %117 = vrot.lane.b32.xlu0 %v116, 125
  %v118 = vpop.permute.xlu0 %117
  %vm119 = vcmask 23552
  %v121 = vsel %vm119, %v100, 0
  %v123 = vsel %vm119, %v105, 0
  %v125 = vsel %vm119, %v118, 0
  %127 = vmatprep.subr.mxu0 0.0
  %128 = vmatpush1.xpose.msra.mxu0 %v125
  %129 = vmatprep.subr.mxu0 0.0
  %130 = vmatpush1.xpose.msra.mxu0 0.0
  %131 = vmatprep.subr.mxu0 0.0
  %132 = vmatpush1.xpose.msra.mxu0 0.0
  %133 = vmatprep.subr.mxu0 0.0
  %134 = vmatpush1.xpose.msra.mxu0 0.0
  %135 = vmatprep.subr.mxu0 0.0
  %136 = vmatpush1.xpose.msra.mxu0 0.0
  %137 = vmatprep.subr.mxu0 0.0
  %138 = vmatpush1.xpose.msra.mxu0 0.0
  %139 = vmatprep.subr.mxu0 0.0
  %140 = vmatpush1.xpose.msra.mxu0 0.0
  %141 = vmatprep.subr.mxu0 0.0
  %142 = vmatpush1.xpose.msra.mxu0 0.0
  %143 = vmatprep.subr.mxu0 0.0
  %144 = vmatpush1.xpose.msra.mxu0 0.0
  %145 = vmatprep.subr.mxu0 0.0
  %146 = vmatpush1.xpose.msra.mxu0 0.0
  %147 = vmatprep.subr.mxu0 0.0
  %148 = vmatpush1.xpose.msra.mxu0 0.0
  %149 = vmatprep.subr.mxu0 0.0
  %150 = vmatpush1.xpose.msra.mxu0 0.0
  %151 = vmatprep.subr.mxu0 0.0
  %152 = vmatpush1.xpose.msra.mxu0 0.0
  %153 = vmatprep.subr.mxu0 0.0
  %154 = vmatpush1.xpose.msra.mxu0 0.0
  %155 = vmatprep.subr.mxu0 0.0
  %156 = vmatpush1.xpose.msra.mxu0 0.0
  %157 = vmatprep.subr.mxu0 0.0
  %158 = vmatpush1.xpose.msra.mxu0 0.0
  %159 = vmatprep.subr.mxu0 0.0
  %160 = vmatpush1.xpose.msra.mxu0 0.0
  %161 = vmatprep.subr.mxu0 0.0
  %162 = vmatpush1.xpose.msra.mxu0 0.0
  %163 = vmatprep.subr.mxu0 0.0
  %164 = vmatpush1.xpose.msra.mxu0 0.0
  %165 = vmatprep.subr.mxu0 0.0
  %166 = vmatpush1.xpose.msra.mxu0 0.0
  %167 = vmatprep.subr.mxu0 0.0
  %168 = vmatpush1.xpose.msra.mxu0 0.0
  %169 = vmatprep.subr.mxu0 0.0
  %170 = vmatpush1.xpose.msra.mxu0 0.0
  %171 = vmatprep.subr.mxu0 0.0
  %172 = vmatpush1.xpose.msra.mxu0 0.0
  %173 = vmatprep.subr.mxu0 0.0
  %174 = vmatpush1.xpose.msra.mxu0 0.0
  %175 = vmatprep.subr.mxu0 0.0
  %176 = vmatpush1.xpose.msra.mxu0 0.0
  %177 = vmatprep.subr.mxu0 0.0
  %178 = vmatpush1.xpose.msra.mxu0 0.0
  %179 = vmatprep.subr.mxu0 0.0
  %180 = vmatpush1.xpose.msra.mxu0 0.0
  %181 = vmatprep.subr.mxu0 0.0
  %182 = vmatpush1.xpose.msra.mxu0 0.0
  %183 = vmatprep.subr.mxu0 0.0
  %184 = vmatpush1.xpose.msra.mxu0 0.0
  %185 = vmatprep.subr.mxu0 0.0
  %186 = vmatpush1.xpose.msra.mxu0 0.0
  %187 = vmatprep.subr.mxu0 0.0
  %188 = vmatpush1.xpose.msra.mxu0 0.0
  %189 = vmatprep.subr.mxu0 0.0
  %190 = vmatpush1.xpose.msra.mxu0 0.0
  %191 = vmatprep.mubr.f32.mxu0 0.0
  %192 = vmatmul.mubr.f32.gmra.mrb[0].mxu0 %v121
  %v193 = vpop.f32.mrb[0].mxu0
  %v194 = vadd.f32 %v113, %v193
  %v195 = vpop.f32.mrb[0].mxu0
  %196 = vmatprep.mubr.f32.mxu0 0.0
  %197 = vmatmul.mubr.f32.gmra.mrb[0].mxu0 %v123
  %v198 = vpop.f32.mrb[0].mxu0
  %v199 = vadd.f32 %v114, %v198
  %v200 = vpop.f32.mrb[0].mxu0
  %201 = vdwg.mxu0
  %vm202 = vcmask 48128
  %v203 = vsel %vm202, %v194, -inf
  %204 = vmax.xlane.f32.xlu0 %v203
  %v205 = vpop.xlane.xlu0 %204
  %vm206 = vcmask 41984
  %v207 = vsel %vm206, %v199, -inf
  %208 = vmax.xlane.f32.xlu0 %v207
  %v209 = vpop.xlane.xlu0 %208
  %v210 = vsub.f32 %v194, %v205
  %v211 = vsub.f32 %v199, %v209
  %v212 = vmul.f32 %v210, 1.442695
  %v213 = vpow.pop %v212
  %v214 = vmul.f32 %v211, 1.442695
  %v215 = vpow.pop %v214
  %v216 = vsel %vm202, %v213, 0.0
  %217 = vadd.xlane.f32.xlu0 %v216
  %v218 = vpop.xlane.xlu0 %217
  %v219 = vsel %vm206, %v215, 0.0
  %220 = vadd.xlane.f32.xlu0 %v219
  %v221 = vpop.xlane.xlu0 %220
  %v222 = vrcp.pop %v218
  %v223 = vmul.f32 %v213, %v222
  %v224 = vrcp.pop %v221
  %v225 = vmul.f32 %v215, %v224
  %s226 = scalar_lea.vmem %s2, 16
  %v227 = vld [vmem:[%s226] sm:$0xff]
  %v228 = vld [vmem:[%s226 + $0x8] sm:$0x3]
  %v229 = vmul.f32 %v223, %v227
  %v230 = vmul.f32 %v225, %v228
  %232 = vrot.lane.b32.xlu0 %v110, 122
  %v233 = vpop.permute.xlu0 %232
  %v235 = vsel %vm202, %v229, 0
  %v238 = vsel %vm202, %v230, 0
  %vm240 = vcmask 1045504
  %v241 = vsel %vm240, %v233, 0
  %243 = vmatprep.subr.mxu0 0.0
  %244 = vmatpush1.msra.mxu0 %v241
  %245 = vmatprep.subr.mxu0 0.0
  %246 = vmatpush1.msra.mxu0 0.0
  %247 = vmatprep.subr.mxu0 0.0
  %248 = vmatpush1.msra.mxu0 0.0
  %249 = vmatprep.subr.mxu0 0.0
  %250 = vmatpush1.msra.mxu0 0.0
  %251 = vmatprep.subr.mxu0 0.0
  %252 = vmatpush1.msra.mxu0 0.0
  %253 = vmatprep.subr.mxu0 0.0
  %254 = vmatpush1.msra.mxu0 0.0
  %255 = vmatprep.subr.mxu0 0.0
  %256 = vmatpush1.msra.mxu0 0.0
  %257 = vmatprep.subr.mxu0 0.0
  %258 = vmatpush1.msra.mxu0 0.0
  %259 = vmatprep.subr.mxu0 0.0
  %260 = vmatpush1.msra.mxu0 0.0
  %261 = vmatprep.subr.mxu0 0.0
  %262 = vmatpush1.msra.mxu0 0.0
  %263 = vmatprep.subr.mxu0 0.0
  %264 = vmatpush1.msra.mxu0 0.0
  %265 = vmatprep.subr.mxu0 0.0
  %266 = vmatpush1.msra.mxu0 0.0
  %267 = vmatprep.subr.mxu0 0.0
  %268 = vmatpush1.msra.mxu0 0.0
  %269 = vmatprep.subr.mxu0 0.0
  %270 = vmatpush1.msra.mxu0 0.0
  %271 = vmatprep.subr.mxu0 0.0
  %272 = vmatpush1.msra.mxu0 0.0
  %273 = vmatprep.subr.mxu0 0.0
  %274 = vmatpush1.msra.mxu0 0.0
  %275 = vmatprep.subr.mxu0 0.0
  %276 = vmatpush1.msra.mxu0 0.0
  %277 = vmatprep.subr.mxu0 0.0
  %278 = vmatpush1.msra.mxu0 0.0
  %279 = vmatprep.subr.mxu0 0.0
  %280 = vmatpush1.msra.mxu0 0.0
  %281 = vmatprep.subr.mxu0 0.0
  %282 = vmatpush1.msra.mxu0 0.0
  %283 = vmatprep.subr.mxu0 0.0
  %284 = vmatpush1.msra.mxu0 0.0
  %285 = vmatprep.subr.mxu0 0.0
  %286 = vmatpush1.msra.mxu0 0.0
  %287 = vmatprep.subr.mxu0 0.0
  %288 = vmatpush1.msra.mxu0 0.0
  %289 = vmatprep.subr.mxu0 0.0
  %290 = vmatpush1.msra.mxu0 0.0
  %291 = vmatprep.subr.mxu0 0.0
  %292 = vmatpush1.msra.mxu0 0.0
  %293 = vmatprep.subr.mxu0 0.0
  %294 = vmatpush1.msra.mxu0 0.0
  %295 = vmatprep.subr.mxu0 0.0
  %296 = vmatpush1.msra.mxu0 0.0
  %297 = vmatprep.subr.mxu0 0.0
  %298 = vmatpush1.msra.mxu0 0.0
  %299 = vmatprep.subr.mxu0 0.0
  %300 = vmatpush1.msra.mxu0 0.0
  %301 = vmatprep.subr.mxu0 0.0
  %302 = vmatpush1.msra.mxu0 0.0
  %303 = vmatprep.subr.mxu0 0.0
  %304 = vmatpush1.msra.mxu0 0.0
  %305 = vmatprep.subr.mxu0 0.0
  %306 = vmatpush1.msra.mxu0 0.0
  %307 = vmatprep.mubr.f32.mxu0 0.0
  %308 = vmatmul.mubr.f32.gmra.mrb[0].mxu0 %v235
  %v309 = vpop.f32.mrb[0].mxu0
  %v310 = vadd.f32 0.0, %v309
  %v311 = vpop.f32.mrb[0].mxu0
  %312 = vmatprep.mubr.f32.mxu0 0.0
  %313 = vmatmul.mubr.f32.gmra.mrb[0].mxu0 %v238
  %v314 = vpop.f32.mrb[0].mxu0
  %v315 = vadd.f32 0.0, %v314
  %v316 = vpop.f32.mrb[0].mxu0
  %317 = vdwg.mxu0
  %318 = vst.msk [vmem:[%s3] sm:$0xff] %vm119, %v310
  %vm319 = vcmask 17408
  %320 = vst.msk [vmem:[%s3 + $0x8] sm:$0x3] %vm319, %v315
  // Predicated region
  $region14: #{tpu_custom_call.1} parent=0 // pred_check
    _
  $region15: #{tpu_custom_call.1} parent=0 // pred_check_branch
    %322 = sbr.rel (0) target = $region17
  $region16: #{tpu_custom_call.1} parent=0 // pred_region
    _
  $region17: #{tpu_custom_call.1} parent=0 // pred_fallthru
    _
  // Predicated region
  $region18: #{tpu_custom_call.1} parent=0 // pred_check
    _
  $region19: #{tpu_custom_call.1} parent=0 // pred_check_branch
    %324 = sbr.rel (0) target = $region21
  $region20: #{tpu_custom_call.1} parent=0 // pred_region
    _
  $region21: #{tpu_custom_call.1} parent=0 // pred_fallthru
    _

</llo_original>
